<compile_context>
chip_gen: v7x
topology: tpu7x:2x2x1
jax: 0.10.0
libtpu: 0.0.40
codegen_flags: <defaults>
</compile_context>

<pallas_src>
import functools

import jax
import jax.numpy as jnp
from jax.experimental import pallas as pl
from jax.experimental.pallas import tpu as pltpu


# --------------------------------- kernel -----------------------------------
def _projector_kernel(num_rest, x_ref, stats_ref, m0_ref, w0b_ref, b0_ref, *refs):
    """Fused Projector forward for one batch tile.

    refs = (w1, b1, ..., w_{L-1}, b_{L-1}, w_last_padded, y_ref)

      x_ref     : [TB, S*E]  bf16   flattened series tile
      stats_ref : [TB, E]    bf16
      m0_ref    : [S*E, H0]  bf16   block-circulant (conv @ concat @ Linear0)
      w0b_ref   : [E, H0]    bf16   stats half of the first Linear
      b0_ref    : [1, H0]    f32
    """
    y_ref = refs[-1]
    wrefs = refs[:-1]

    # conv + concat + first Linear + bias + ReLU, all as MXU work (f32 acc).
    h = jnp.dot(x_ref[...], m0_ref[...], preferred_element_type=jnp.float32)
    h = h + jnp.dot(stats_ref[...], w0b_ref[...], preferred_element_type=jnp.float32)
    h = jnp.maximum(h + b0_ref[...], 0.0)

    # Remaining hidden layers (static Python loop; layer count is a Python int).
    i = 0
    for _ in range(num_rest):
        w = wrefs[i][...]                           # bf16 [in, out]
        b = wrefs[i + 1][...]                       # f32  [1, out]
        h = jnp.maximum(
            jnp.dot(h.astype(jnp.bfloat16), w, preferred_element_type=jnp.float32) + b,
            0.0)
        i += 2

    # Final Linear (bias=False), output lanes zero-padded to a multiple of 128.
    y = jnp.dot(h.astype(jnp.bfloat16), wrefs[i][...],
                preferred_element_type=jnp.float32)
    y_ref[...] = y.astype(y_ref.dtype)


# --------------------------- one-time weight prep ----------------------------
def prepare_params(params, *, seq_len, enc_in, padding=1):
    """Fold conv+concat+Linear0 into one matmul, pre-cast weights to bf16,
    and pad the output dim lane-dense.  Call ONCE, reuse across forward calls."""
    conv_w = jnp.asarray(params["conv_w"], jnp.float32)[0]       # [S, K]
    K = conv_w.shape[-1]
    # TODO(synk): torch hard-codes padding=1; kernel_size != 3 changes the conv
    # output length in PyTorch and is not handled here.

    hidden = params["hidden"]
    w0, b0 = hidden[0]
    w0 = jnp.asarray(w0, jnp.float32)                            # [2E, H0]
    E, S = enc_in, seq_len
    w0_top, w0_bot = w0[:E], w0[E:]                              # [E, H0] each

    # conv[b,e] = sum_{s,k} W[s,k] * x[b,s,(e+k-pad)%E]
    # => (conv @ w0_top)[b,h] = sum_{s,j} x[b,s,j] * M0[s,j,h] with
    #    M0[s,j,h] = sum_k W[s,k] * w0_top[(j-k+pad)%E, h]
    rolled = jnp.stack([jnp.roll(w0_top, k - padding, axis=0) for k in range(K)], 0)
    m0 = jnp.einsum("sk,kjh->sjh", conv_w, rolled).reshape(S * E, -1)

    rest = []
    for w, b in hidden[1:]:
        rest.append(jnp.asarray(w, jnp.bfloat16))
        rest.append(jnp.asarray(b, jnp.float32).reshape(1, -1))

    w_last = jnp.asarray(params["w_last"], jnp.float32)          # [H_last, O]
    O = w_last.shape[-1]
    O_pad = max(128, ((O + 127) // 128) * 128)                    # lane-dense out
    w_last_p = jnp.zeros((w_last.shape[0], O_pad), jnp.float32).at[:, :O].set(w_last)

    return dict(
        m0=m0.astype(jnp.bfloat16),
        w0_bot=w0_bot.astype(jnp.bfloat16),
        b0=jnp.asarray(b0, jnp.float32).reshape(1, -1),
        rest=tuple(rest),
        w_last=w_last_p.astype(jnp.bfloat16),
        output_dim=O,
        seq_len=S,
        enc_in=E,
    )


# -------------------------------- wrapper ------------------------------------
def projector_forward(x, stats, prepared, *, block_b=None,
                      vmem_limit_bytes=32 * 1024 * 1024):
    """x: [B, seq_len, enc_in], stats: [B, 1, enc_in] -> y: [B, output_dim]."""
    B, S, E = x.shape
    assert S == prepared["seq_len"] and E == prepared["enc_in"]
    O = prepared["output_dim"]
    O_pad = prepared["w_last"].shape[-1]
    num_rest = len(prepared["rest"]) // 2

    # Big batch tiles: at most 2 grid steps by default (one per v7x TensorCore;
    # on v5e/v6e the extra step costs ~0.35 us).  Tiles are sublane-aligned.
    tb = -(-B // 2) if block_b is None else min(block_b, B)
    tb = max(16, ((tb + 15) // 16) * 16)          # bf16-friendly sublane alignment
    Bp = -(-B // tb) * tb                          # pad ragged batches

    x2d = x.reshape(B, S * E).astype(jnp.bfloat16)            # x is the big stream
    st2d = stats.reshape(B, E).astype(jnp.bfloat16)
    if Bp != B:
        x2d = jnp.pad(x2d, ((0, Bp - B), (0, 0)))
        st2d = jnp.pad(st2d, ((0, Bp - B), (0, 0)))

    vmem_full = pl.BlockSpec(memory_space=pltpu.MemorySpace.VMEM)   # resident weights
    weight_args = (prepared["m0"], prepared["w0_bot"], prepared["b0"],
                   *prepared["rest"], prepared["w_last"])

    kernel = functools.partial(_projector_kernel, num_rest)
    y = pl.pallas_call(
        kernel,
        grid=(Bp // tb,),
        out_shape=jax.ShapeDtypeStruct((Bp, O_pad), jnp.float32),
        in_specs=[
            pl.BlockSpec((tb, S * E), lambda b: (b, 0)),   # x     (batch-tiled, bf16)
            pl.BlockSpec((tb, E), lambda b: (b, 0)),       # stats (batch-tiled, bf16)
        ] + [vmem_full] * len(weight_args),                # whole weights, VMEM-resident
        out_specs=pl.BlockSpec((tb, O_pad), lambda b: (b, 0)),
        compiler_params=pltpu.CompilerParams(
            dimension_semantics=("parallel",),
            vmem_limit_bytes=vmem_limit_bytes),
    )(x2d, st2d, *weight_args)

    return y[:B, :O]


# ---------------------------- parameter setup --------------------------------
def init_params(key, *, seq_len, enc_in, hidden_dims, hidden_layers,
                output_dim, kernel_size=3):
    assert len(hidden_dims) == hidden_layers
    ks = jax.random.split(key, hidden_layers + 2)

    def lin(k, fan_in, fan_out, bias=True, scale=0.05):
        kw, kb = jax.random.split(k)
        w = scale * jax.random.normal(kw, (fan_in, fan_out), jnp.float32)
        b = scale * jax.random.normal(kb, (1, fan_out), jnp.float32) if bias else None
        return w, b

    conv_w = 0.1 * jax.random.normal(ks[0], (1, seq_len, kernel_size), jnp.float32)

    dims = [2 * enc_in] + list(hidden_dims)
    hidden = []
    for i in range(hidden_layers):
        w, b = lin(ks[1 + i], dims[i], dims[i + 1])
        hidden.append((w, b))
    w_last, _ = lin(ks[1 + hidden_layers], hidden_dims[-1], output_dim, bias=False)

    return dict(conv_w=conv_w, hidden=hidden, w_last=w_last)


# --------------------------- pure-JAX reference -------------------------------
def projector_ref(x, stats, params):
    B, S, E = x.shape
    W = params["conv_w"][0]                                     # [S, K]
    K = W.shape[-1]
    pad = 1
    conv = jnp.zeros((B, E), jnp.float32)
    for k in range(K):
        conv = conv + jnp.einsum("bse,s->be", jnp.roll(x, pad - k, axis=-1), W[:, k])
    h = jnp.concatenate([conv, stats.reshape(B, -1)], axis=-1)
    for w, b in params["hidden"]:
        h = jnp.maximum(h @ w + b, 0.0)
    return h @ params["w_last"]


# ----------------------------------- main ------------------------------------
if __name__ == "__main__":
    B, seq_len, enc_in = 32, 8, 16
    hidden_dims, hidden_layers, output_dim = [32, 32], 2, 16

    key = jax.random.PRNGKey(0)
    kx, kst, kp = jax.random.split(key, 3)
    x = jax.random.normal(kx, (B, seq_len, enc_in), jnp.float32)
    stats = jax.random.normal(kst, (B, 1, enc_in), jnp.float32)     # e.g. per-variate std
    params = init_params(kp, seq_len=seq_len, enc_in=enc_in,
                         hidden_dims=hidden_dims, hidden_layers=hidden_layers,
                         output_dim=output_dim, kernel_size=3)

    prepared = prepare_params(params, seq_len=seq_len, enc_in=enc_in)

    y = projector_forward(x, stats, prepared)        # 2 parallel grid steps (tb=16)
    y = jax.block_until_ready(y)

    y_ref = projector_ref(x, stats, params)

    assert y.shape == (B, output_dim)
    assert bool(jnp.all(jnp.isfinite(y)))
    # bf16 MXU operands (f32 accumulation) -> loose tolerance vs. f32 reference
    assert bool(jnp.allclose(y, y_ref, rtol=5e-2, atol=1e-2))
    print("KERNEL_OK")
</pallas_src>

<mosaic_0001>
module attributes {stable_mosaic.version = 11 : i64} {
  func.func @_projector_kernel(%arg0: i32, %arg1: memref<16x128xbf16, #tpu.memory_space<vmem>>, %arg2: memref<16x16xbf16, #tpu.memory_space<vmem>>, %arg3: memref<128x32xbf16, #tpu.memory_space<vmem>>, %arg4: memref<16x32xbf16, #tpu.memory_space<vmem>>, %arg5: memref<1x32xf32, #tpu.memory_space<vmem>>, %arg6: memref<32x32xbf16, #tpu.memory_space<vmem>>, %arg7: memref<1x32xf32, #tpu.memory_space<vmem>>, %arg8: memref<32x128xbf16, #tpu.memory_space<vmem>>, %arg9: memref<16x128xf32, #tpu.memory_space<vmem>>) attributes {dimension_semantics = [#tpu.dimension_semantics<parallel>], iteration_bounds = array<i64: 2>, scalar_prefetch = 0 : i64, scratch_operands = 0 : i64, tpu.core_type = #tpu.core_type<tc>, window_params = [{transform_indices = @transform_0, window_bounds = array<i64: 16, 128>}, {transform_indices = @transform_1, window_bounds = array<i64: 16, 16>}, {pipeline_mode = #tpu.pipeline_mode<synchronous>, transform_indices = @transform_2, window_bounds = array<i64: 128, 32>}, {pipeline_mode = #tpu.pipeline_mode<synchronous>, transform_indices = @transform_3, window_bounds = array<i64: 16, 32>}, {pipeline_mode = #tpu.pipeline_mode<synchronous>, transform_indices = @transform_4, window_bounds = array<i64: 1, 32>}, {pipeline_mode = #tpu.pipeline_mode<synchronous>, transform_indices = @transform_5, window_bounds = array<i64: 32, 32>}, {pipeline_mode = #tpu.pipeline_mode<synchronous>, transform_indices = @transform_6, window_bounds = array<i64: 1, 32>}, {pipeline_mode = #tpu.pipeline_mode<synchronous>, transform_indices = @transform_7, window_bounds = array<i64: 32, 128>}, {transform_indices = @transform_8, window_bounds = array<i64: 16, 128>}]} {
    %c0 = arith.constant 0 : index
    %c0_0 = arith.constant 0 : index
    %0 = vector.load %arg1[%c0, %c0_0] : memref<16x128xbf16, #tpu.memory_space<vmem>>, vector<16x128xbf16>
    %c0_1 = arith.constant 0 : index
    %c0_2 = arith.constant 0 : index
    %1 = vector.load %arg3[%c0_1, %c0_2] : memref<128x32xbf16, #tpu.memory_space<vmem>>, vector<128x32xbf16>
    %cst = arith.constant dense<0.000000e+00> : vector<16x32xf32>
    %2 = tpu.matmul %0, %1, %cst {dimension_numbers = #tpu.dot_dimension_numbers<[1], [0], [0], [1], [0, 0, 1, 1], [], []>} : vector<16x128xbf16>, vector<128x32xbf16>, vector<16x32xf32> -> vector<16x32xf32>
    %c0_3 = arith.constant 0 : index
    %c0_4 = arith.constant 0 : index
    %3 = vector.load %arg2[%c0_3, %c0_4] : memref<16x16xbf16, #tpu.memory_space<vmem>>, vector<16x16xbf16>
    %c0_5 = arith.constant 0 : index
    %c0_6 = arith.constant 0 : index
    %4 = vector.load %arg4[%c0_5, %c0_6] : memref<16x32xbf16, #tpu.memory_space<vmem>>, vector<16x32xbf16>
    %cst_7 = arith.constant dense<0.000000e+00> : vector<16x32xf32>
    %5 = tpu.matmul %3, %4, %cst_7 {dimension_numbers = #tpu.dot_dimension_numbers<[1], [0], [0], [1], [0, 0, 1, 1], [], []>} : vector<16x16xbf16>, vector<16x32xbf16>, vector<16x32xf32> -> vector<16x32xf32>
    %6 = arith.addf %2, %5 : vector<16x32xf32>
    %c0_8 = arith.constant 0 : index
    %c0_9 = arith.constant 0 : index
    %7 = vector.load %arg5[%c0_8, %c0_9] : memref<1x32xf32, #tpu.memory_space<vmem>>, vector<1x32xf32>
    %8 = vector.broadcast %7 : vector<1x32xf32> to vector<16x32xf32>
    %9 = arith.addf %6, %8 : vector<16x32xf32>
    %cst_10 = arith.constant 0.000000e+00 : f32
    %10 = vector.broadcast %cst_10 : f32 to vector<16x32xf32>
    %11 = arith.maximumf %9, %10 : vector<16x32xf32>
    %c0_11 = arith.constant 0 : index
    %c0_12 = arith.constant 0 : index
    %12 = vector.load %arg6[%c0_11, %c0_12] : memref<32x32xbf16, #tpu.memory_space<vmem>>, vector<32x32xbf16>
    %c0_13 = arith.constant 0 : index
    %c0_14 = arith.constant 0 : index
    %13 = vector.load %arg7[%c0_13, %c0_14] : memref<1x32xf32, #tpu.memory_space<vmem>>, vector<1x32xf32>
    %14 = arith.truncf %11 : vector<16x32xf32> to vector<16x32xbf16>
    %cst_15 = arith.constant dense<0.000000e+00> : vector<16x32xf32>
    %15 = tpu.matmul %14, %12, %cst_15 {dimension_numbers = #tpu.dot_dimension_numbers<[1], [0], [0], [1], [0, 0, 1, 1], [], []>} : vector<16x32xbf16>, vector<32x32xbf16>, vector<16x32xf32> -> vector<16x32xf32>
    %16 = vector.broadcast %13 : vector<1x32xf32> to vector<16x32xf32>
    %17 = arith.addf %15, %16 : vector<16x32xf32>
    %cst_16 = arith.constant 0.000000e+00 : f32
    %18 = vector.broadcast %cst_16 : f32 to vector<16x32xf32>
    %19 = arith.maximumf %17, %18 : vector<16x32xf32>
    %20 = arith.truncf %19 : vector<16x32xf32> to vector<16x32xbf16>
    %c0_17 = arith.constant 0 : index
    %c0_18 = arith.constant 0 : index
    %21 = vector.load %arg8[%c0_17, %c0_18] : memref<32x128xbf16, #tpu.memory_space<vmem>>, vector<32x128xbf16>
    %cst_19 = arith.constant dense<0.000000e+00> : vector<16x128xf32>
    %22 = tpu.matmul %20, %21, %cst_19 {dimension_numbers = #tpu.dot_dimension_numbers<[1], [0], [0], [1], [0, 0, 1, 1], [], []>} : vector<16x32xbf16>, vector<32x128xbf16>, vector<16x128xf32> -> vector<16x128xf32>
    %c0_20 = arith.constant 0 : index
    %c0_21 = arith.constant 0 : index
    %23 = vector.load %arg9[%c0_20, %c0_21] : memref<16x128xf32, #tpu.memory_space<vmem>>, vector<16x128xf32>
    tpu.vector_store %arg9[%c0_20, %c0_21], %22 {strides = array<i32>} : memref<16x128xf32, #tpu.memory_space<vmem>>, vector<16x128xf32>,
    return
  }
  func.func @transform_0(%arg0: i32) -> (i32, i32) {
    %c0_i32 = arith.constant 0 : i32
    %c0_i32_0 = arith.constant 0 : i32
    return %arg0, %c0_i32 : i32, i32
  }
  func.func @transform_1(%arg0: i32) -> (i32, i32) {
    %c0_i32 = arith.constant 0 : i32
    %c0_i32_0 = arith.constant 0 : i32
    return %arg0, %c0_i32 : i32, i32
  }
  func.func @transform_2(%arg0: i32) -> (i32, i32) {
    %c0_i32 = arith.constant 0 : i32
    %c0_i32_0 = arith.constant 0 : i32
    %c0_i32_1 = arith.constant 0 : i32
    return %c0_i32, %c0_i32_0 : i32, i32
  }
  func.func @transform_3(%arg0: i32) -> (i32, i32) {
    %c0_i32 = arith.constant 0 : i32
    %c0_i32_0 = arith.constant 0 : i32
    %c0_i32_1 = arith.constant 0 : i32
    return %c0_i32, %c0_i32_0 : i32, i32
  }
  func.func @transform_4(%arg0: i32) -> (i32, i32) {
    %c0_i32 = arith.constant 0 : i32
    %c0_i32_0 = arith.constant 0 : i32
    %c0_i32_1 = arith.constant 0 : i32
    return %c0_i32, %c0_i32_0 : i32, i32
  }
  func.func @transform_5(%arg0: i32) -> (i32, i32) {
    %c0_i32 = arith.constant 0 : i32
    %c0_i32_0 = arith.constant 0 : i32
    %c0_i32_1 = arith.constant 0 : i32
    return %c0_i32, %c0_i32_0 : i32, i32
  }
  func.func @transform_6(%arg0: i32) -> (i32, i32) {
    %c0_i32 = arith.constant 0 : i32
    %c0_i32_0 = arith.constant 0 : i32
    %c0_i32_1 = arith.constant 0 : i32
    return %c0_i32, %c0_i32_0 : i32, i32
  }
  func.func @transform_7(%arg0: i32) -> (i32, i32) {
    %c0_i32 = arith.constant 0 : i32
    %c0_i32_0 = arith.constant 0 : i32
    %c0_i32_1 = arith.constant 0 : i32
    return %c0_i32, %c0_i32_0 : i32, i32
  }
  func.func @transform_8(%arg0: i32) -> (i32, i32) {
    %c0_i32 = arith.constant 0 : i32
    %c0_i32_0 = arith.constant 0 : i32
    return %arg0, %c0_i32 : i32, i32
  }
}

</mosaic_0001>

<llo_original>
// kernel: tpu_custom_call.1
$region0: #{tpu_custom_call.1}
  #allocation0 [shape = 'u32[]', space=smem, size = 0x4, offset = 0x4, fixed_abs, tag = 'smem constant byte address 0x4 - core index']
  #allocation1 [shape = 'u32[144,128]{1,0:T(1,128)}', space=vmem, size = 0x12000, scoped, tag = 'internal scratch']
  %s0 = inlined_call_operand.vmem [shape: bf16[32,128], index: 0, kind: input, shape index: {}]
  %s1 = inlined_call_operand.vmem [shape: bf16[32,16], index: 1, kind: input, shape index: {}]
  %s2 = inlined_call_operand.vmem [shape: bf16[128,32], index: 2, kind: input, shape index: {}]
  %s3 = inlined_call_operand.vmem [shape: bf16[16,32], index: 3, kind: input, shape index: {}]
  %s4 = inlined_call_operand.vmem [shape: f32[1,32], index: 4, kind: input, shape index: {}]
  %s5 = inlined_call_operand.vmem [shape: bf16[32,32], index: 5, kind: input, shape index: {}]
  %s6 = inlined_call_operand.vmem [shape: f32[1,32], index: 6, kind: input, shape index: {}]
  %s7 = inlined_call_operand.vmem [shape: bf16[32,128], index: 7, kind: input, shape index: {}]
  %s8 = inlined_call_operand.hbm [shape: f32[32,128], index: 8, kind: output, shape index: {}]
  %s9 = sld [smem:[#allocation0]]
  $region65: #{tpu_custom_call.1} parent=0
    _
  %s11 = ssub.s32 1, %s9
  %s12 = scalar_select 0, %s11, %s9
  $region1: #{tpu_custom_call.1} parent=0
    #allocation2 [shape = 'u8[16384]{0}', space=vmem, size = 0x4000, scoped, tag = 'output window, operand 0']
    #allocation3 [shape = 's32[2]{0}', space=sflag, size = 0x8, scoped, tag = 'scoped memory for tpu_custom_call.1']
    %13 = vsyncpa [#allocation3], 0
    %s14 = scalar_lea.sflag [#allocation3], 1
    %15 = vsyncpa %s14, 0
    loop: start=0, step=1, limit=4
    $region2: #{tpu_custom_call.1} parent=1 // loop_pre_header
      _
    $region3: #{tpu_custom_call.1} parent=1 // loop_header
      %s17 = sphi 0, %s21
      %p18 = scmp.ge.s32.totalorder %s17, 4
      %s27 = sphi 0, %s29
      %s30 = sphi 0, %s27
      %s31 = sphi 0, %s30
      %s47 = sphi 0, %s31
      %s53 = sphi 0, %s55
      %s56 = sphi 0, %s53
      %s57 = sphi 0, %s56
      %s73 = sphi 0, %s57
      %s77 = sphi 0, %s77
      %s79 = sphi 0, %s77
      %s80 = sphi 0, %s79
      %s94 = sphi 0, %s80
      %s98 = sphi 0, %s98
      %s100 = sphi 0, %s98
      %s101 = sphi 0, %s100
      %s115 = sphi 0, %s101
      %s119 = sphi 0, %s119
      %s121 = sphi 0, %s119
      %s122 = sphi 0, %s121
      %s136 = sphi 0, %s122
      %s140 = sphi 0, %s140
      %s142 = sphi 0, %s140
      %s143 = sphi 0, %s142
      %s157 = sphi 0, %s143
      %s161 = sphi 0, %s161
      %s163 = sphi 0, %s161
      %s164 = sphi 0, %s163
      %s178 = sphi 0, %s164
      %s182 = sphi 0, %s182
      %s184 = sphi 0, %s182
      %s185 = sphi 0, %s184
      %s199 = sphi 0, %s185
      %s205 = sphi 0, %s207
      %s208 = sphi 0, %s205
      %s209 = sphi 0, %s208
      %s225 = sphi 0, %s209
    $region4: #{tpu_custom_call.1} parent=1 // loop_header_branch
      %20 = sbr.rel (%p18) target = $region8
    $region5: #{tpu_custom_call.1} parent=1 // loop_body
      %s22 = ssub.s32 %s17, 1
      %s23 = ssub.s32 %s17, 2
      %s24 = sadd.s32 %s17, 1
      %s25 = ssub.s32 %s17, %s24
      %p26 = scmp.eq.s32.totalorder %s25, 0
      %s28 = sadd.s32 %s27, 1
      %s29 = scalar_select %p26, %s27, %s28
      %p32 = pneg %p26
      %p33 = scmp.eq.s32.totalorder %s17, 1
      %p34 = por %p32, %p33
      %p35 = scmp.ne.s32.totalorder %s27, %s30
      %p36 = scmp.eq.s32.totalorder %s17, 0
      %p37 = por %p35, %p36
      %p38 = scmp.ne.s32.totalorder %s27, %s30
      %p39 = scmp.eq.s32.totalorder %s22, 1
      %p40 = por %p38, %p39
      %p41 = scmp.ne.s32.totalorder %s30, %s31
      %p42 = scmp.eq.s32.totalorder %s22, 0
      %p43 = por %p41, %p42
      %p44 = scmp.ne.s32.totalorder %s30, %s31
      %p45 = scmp.eq.s32.totalorder %s23, 1
      %p46 = por %p44, %p45
      %p48 = scmp.ne.s32.totalorder %s31, %s47
      %p49 = scmp.eq.s32.totalorder %s23, 0
      %p50 = por %p48, %p49
      %s51 = ssub.s32 %s17, %s24
      %p52 = scmp.eq.s32.totalorder %s51, 0
      %s54 = sadd.s32 %s53, 1
      %s55 = scalar_select %p52, %s53, %s54
      %p58 = pneg %p52
      %p59 = scmp.eq.s32.totalorder %s17, 1
      %p60 = por %p58, %p59
      %p61 = scmp.ne.s32.totalorder %s53, %s56
      %p62 = scmp.eq.s32.totalorder %s17, 0
      %p63 = por %p61, %p62
      %p64 = scmp.ne.s32.totalorder %s53, %s56
      %p65 = scmp.eq.s32.totalorder %s22, 1
      %p66 = por %p64, %p65
      %p67 = scmp.ne.s32.totalorder %s56, %s57
      %p68 = scmp.eq.s32.totalorder %s22, 0
      %p69 = por %p67, %p68
      %p70 = scmp.ne.s32.totalorder %s56, %s57
      %p71 = scmp.eq.s32.totalorder %s23, 1
      %p72 = por %p70, %p71
      %p74 = scmp.ne.s32.totalorder %s57, %s73
      %p75 = scmp.eq.s32.totalorder %s23, 0
      %p76 = por %p74, %p75
      %s78 = sadd.s32 %s77, 1
      %p81 = scmp.eq.s32.totalorder %s17, 1
      %p82 = scmp.ne.s32.totalorder %s77, %s79
      %p83 = scmp.eq.s32.totalorder %s17, 0
      %p84 = por %p82, %p83
      %p85 = scmp.ne.s32.totalorder %s77, %s79
      %p86 = scmp.eq.s32.totalorder %s22, 1
      %p87 = por %p85, %p86
      %p88 = scmp.ne.s32.totalorder %s79, %s80
      %p89 = scmp.eq.s32.totalorder %s22, 0
      %p90 = por %p88, %p89
      %p91 = scmp.ne.s32.totalorder %s79, %s80
      %p92 = scmp.eq.s32.totalorder %s23, 1
      %p93 = por %p91, %p92
      %p95 = scmp.ne.s32.totalorder %s80, %s94
      %p96 = scmp.eq.s32.totalorder %s23, 0
      %p97 = por %p95, %p96
      %s99 = sadd.s32 %s98, 1
      %p102 = scmp.eq.s32.totalorder %s17, 1
      %p103 = scmp.ne.s32.totalorder %s98, %s100
      %p104 = scmp.eq.s32.totalorder %s17, 0
      %p105 = por %p103, %p104
      %p106 = scmp.ne.s32.totalorder %s98, %s100
      %p107 = scmp.eq.s32.totalorder %s22, 1
      %p108 = por %p106, %p107
      %p109 = scmp.ne.s32.totalorder %s100, %s101
      %p110 = scmp.eq.s32.totalorder %s22, 0
      %p111 = por %p109, %p110
      %p112 = scmp.ne.s32.totalorder %s100, %s101
      %p113 = scmp.eq.s32.totalorder %s23, 1
      %p114 = por %p112, %p113
      %p116 = scmp.ne.s32.totalorder %s101, %s115
      %p117 = scmp.eq.s32.totalorder %s23, 0
      %p118 = por %p116, %p117
      %s120 = sadd.s32 %s119, 1
      %p123 = scmp.eq.s32.totalorder %s17, 1
      %p124 = scmp.ne.s32.totalorder %s119, %s121
      %p125 = scmp.eq.s32.totalorder %s17, 0
      %p126 = por %p124, %p125
      %p127 = scmp.ne.s32.totalorder %s119, %s121
      %p128 = scmp.eq.s32.totalorder %s22, 1
      %p129 = por %p127, %p128
      %p130 = scmp.ne.s32.totalorder %s121, %s122
      %p131 = scmp.eq.s32.totalorder %s22, 0
      %p132 = por %p130, %p131
      %p133 = scmp.ne.s32.totalorder %s121, %s122
      %p134 = scmp.eq.s32.totalorder %s23, 1
      %p135 = por %p133, %p134
      %p137 = scmp.ne.s32.totalorder %s122, %s136
      %p138 = scmp.eq.s32.totalorder %s23, 0
      %p139 = por %p137, %p138
      %s141 = sadd.s32 %s140, 1
      %p144 = scmp.eq.s32.totalorder %s17, 1
      %p145 = scmp.ne.s32.totalorder %s140, %s142
      %p146 = scmp.eq.s32.totalorder %s17, 0
      %p147 = por %p145, %p146
      %p148 = scmp.ne.s32.totalorder %s140, %s142
      %p149 = scmp.eq.s32.totalorder %s22, 1
      %p150 = por %p148, %p149
      %p151 = scmp.ne.s32.totalorder %s142, %s143
      %p152 = scmp.eq.s32.totalorder %s22, 0
      %p153 = por %p151, %p152
      %p154 = scmp.ne.s32.totalorder %s142, %s143
      %p155 = scmp.eq.s32.totalorder %s23, 1
      %p156 = por %p154, %p155
      %p158 = scmp.ne.s32.totalorder %s143, %s157
      %p159 = scmp.eq.s32.totalorder %s23, 0
      %p160 = por %p158, %p159
      %s162 = sadd.s32 %s161, 1
      %p165 = scmp.eq.s32.totalorder %s17, 1
      %p166 = scmp.ne.s32.totalorder %s161, %s163
      %p167 = scmp.eq.s32.totalorder %s17, 0
      %p168 = por %p166, %p167
      %p169 = scmp.ne.s32.totalorder %s161, %s163
      %p170 = scmp.eq.s32.totalorder %s22, 1
      %p171 = por %p169, %p170
      %p172 = scmp.ne.s32.totalorder %s163, %s164
      %p173 = scmp.eq.s32.totalorder %s22, 0
      %p174 = por %p172, %p173
      %p175 = scmp.ne.s32.totalorder %s163, %s164
      %p176 = scmp.eq.s32.totalorder %s23, 1
      %p177 = por %p175, %p176
      %p179 = scmp.ne.s32.totalorder %s164, %s178
      %p180 = scmp.eq.s32.totalorder %s23, 0
      %p181 = por %p179, %p180
      %s183 = sadd.s32 %s182, 1
      %p186 = scmp.eq.s32.totalorder %s17, 1
      %p187 = scmp.ne.s32.totalorder %s182, %s184
      %p188 = scmp.eq.s32.totalorder %s17, 0
      %p189 = por %p187, %p188
      %p190 = scmp.ne.s32.totalorder %s182, %s184
      %p191 = scmp.eq.s32.totalorder %s22, 1
      %p192 = por %p190, %p191
      %p193 = scmp.ne.s32.totalorder %s184, %s185
      %p194 = scmp.eq.s32.totalorder %s22, 0
      %p195 = por %p193, %p194
      %p196 = scmp.ne.s32.totalorder %s184, %s185
      %p197 = scmp.eq.s32.totalorder %s23, 1
      %p198 = por %p196, %p197
      %p200 = scmp.ne.s32.totalorder %s185, %s199
      %p201 = scmp.eq.s32.totalorder %s23, 0
      %p202 = por %p200, %p201
      %s203 = ssub.s32 %s17, %s24
      %p204 = scmp.eq.s32.totalorder %s203, 0
      %s206 = sadd.s32 %s205, 1
      %s207 = scalar_select %p204, %s205, %s206
      %p210 = pneg %p204
      %p211 = scmp.eq.s32.totalorder %s17, 1
      %p212 = por %p210, %p211
      %p213 = scmp.ne.s32.totalorder %s205, %s208
      %p214 = scmp.eq.s32.totalorder %s17, 0
      %p215 = por %p213, %p214
      %p216 = scmp.ne.s32.totalorder %s205, %s208
      %p217 = scmp.eq.s32.totalorder %s22, 1
      %p218 = por %p216, %p217
      %p219 = scmp.ne.s32.totalorder %s208, %s209
      %p220 = scmp.eq.s32.totalorder %s22, 0
      %p221 = por %p219, %p220
      %p222 = scmp.ne.s32.totalorder %s208, %s209
      %p223 = scmp.eq.s32.totalorder %s23, 1
      %p224 = por %p222, %p223
      %p226 = scmp.ne.s32.totalorder %s209, %s225
      %p227 = scmp.eq.s32.totalorder %s23, 0
      %p228 = por %p226, %p227
      %p229 = scmp.le.s32.totalorder 1, %s17
      %p230 = scmp.lt.s32.totalorder %s17, 3
      %p231 = pnand %p229, %p230
      %p232 = pneg %p231
      // Predicated region
      $region9: #{tpu_custom_call.1} parent=5 // pred_check
        _
      $region10: #{tpu_custom_call.1} parent=5 // pred_check_branch
        %234 = sbr.rel (%p231) target = $region12
      $region11: #{tpu_custom_call.1} parent=5 // pred_region
        %s235 = ssub.s32 %s17, 1
        // Predicated region
        $region13: #{tpu_custom_call.1} parent=11 // pred_check
          %p236 = pneg %p90
        $region14: #{tpu_custom_call.1} parent=11 // pred_check_branch
          %238 = sbr.rel (%p236) target = $region16
        $region15: #{tpu_custom_call.1} parent=11 // pred_region
          _
        $region16: #{tpu_custom_call.1} parent=11 // pred_fallthru
          _
        // Predicated region
        $region17: #{tpu_custom_call.1} parent=11 // pred_check
          %p239 = pneg %p111
        $region18: #{tpu_custom_call.1} parent=11 // pred_check_branch
          %241 = sbr.rel (%p239) target = $region20
        $region19: #{tpu_custom_call.1} parent=11 // pred_region
          _
        $region20: #{tpu_custom_call.1} parent=11 // pred_fallthru
          _
        // Predicated region
        $region21: #{tpu_custom_call.1} parent=11 // pred_check
          %p242 = pneg %p132
        $region22: #{tpu_custom_call.1} parent=11 // pred_check_branch
          %244 = sbr.rel (%p242) target = $region24
        $region23: #{tpu_custom_call.1} parent=11 // pred_region
          _
        $region24: #{tpu_custom_call.1} parent=11 // pred_fallthru
          _
        // Predicated region
        $region25: #{tpu_custom_call.1} parent=11 // pred_check
          %p245 = pneg %p153
        $region26: #{tpu_custom_call.1} parent=11 // pred_check_branch
          %247 = sbr.rel (%p245) target = $region28
        $region27: #{tpu_custom_call.1} parent=11 // pred_region
          _
        $region28: #{tpu_custom_call.1} parent=11 // pred_fallthru
          _
        // Predicated region
        $region29: #{tpu_custom_call.1} parent=11 // pred_check
          %p248 = pneg %p174
        $region30: #{tpu_custom_call.1} parent=11 // pred_check_branch
          %250 = sbr.rel (%p248) target = $region32
        $region31: #{tpu_custom_call.1} parent=11 // pred_region
          _
        $region32: #{tpu_custom_call.1} parent=11 // pred_fallthru
          _
        // Predicated region
        $region33: #{tpu_custom_call.1} parent=11 // pred_check
          %p251 = pneg %p195
        $region34: #{tpu_custom_call.1} parent=11 // pred_check_branch
          %253 = sbr.rel (%p251) target = $region36
        $region35: #{tpu_custom_call.1} parent=11 // pred_region
          _
        $region36: #{tpu_custom_call.1} parent=11 // pred_fallthru
          _
      $region12: #{tpu_custom_call.1} parent=5 // pred_fallthru
        _
      %p254 = scmp.lt.s32.totalorder %s17, 2
      // Predicated region
      $region37: #{tpu_custom_call.1} parent=5 // pred_check
        %p255 = pneg %p254
      $region38: #{tpu_custom_call.1} parent=5 // pred_check_branch
        %257 = sbr.rel (%p255) target = $region40
      $region39: #{tpu_custom_call.1} parent=5 // pred_region
        // Predicated region
        $region41: #{tpu_custom_call.1} parent=39 // pred_check
          %p258 = pneg %p37
        $region42: #{tpu_custom_call.1} parent=39 // pred_check_branch
          %260 = sbr.rel (%p258) target = $region44
        $region43: #{tpu_custom_call.1} parent=39 // pred_region
          %s261 = smul.u32 2, %s17
          %p262 = scmp.lt.s32.totalorder %s261, 3
          %s263 = scalar_select %p262, %s261, 3
          %s264 = smul.addr %s263, 4
          %s265 = scalar_lea.vmem %s0, %s264
          %s266 = smul.u32 2, %s17
        $region44: #{tpu_custom_call.1} parent=39 // pred_fallthru
          _
        // Predicated region
        $region45: #{tpu_custom_call.1} parent=39 // pred_check
          %p267 = pneg %p63
        $region46: #{tpu_custom_call.1} parent=39 // pred_check_branch
          %269 = sbr.rel (%p267) target = $region48
        $region47: #{tpu_custom_call.1} parent=39 // pred_region
          %s270 = smul.u32 2, %s17
          %p271 = scmp.lt.s32.totalorder %s270, 3
          %s272 = scalar_select %p271, %s270, 3
          %s273 = smul.addr %s272, 4
          %s274 = scalar_lea.vmem %s1, %s273
          %s275 = smul.u32 2, %s17
        $region48: #{tpu_custom_call.1} parent=39 // pred_fallthru
          _
      $region40: #{tpu_custom_call.1} parent=5 // pred_fallthru
        _
      %p276 = scmp.le.s32.totalorder 1, %s17
      %p277 = scmp.lt.s32.totalorder %s17, 3
      %p278 = pnand %p276, %p277
      %p279 = pneg %p278
      // Predicated region
      $region49: #{tpu_custom_call.1} parent=5 // pred_check
        _
      $region50: #{tpu_custom_call.1} parent=5 // pred_check_branch
        %281 = sbr.rel (%p278) target = $region52
      $region51: #{tpu_custom_call.1} parent=5 // pred_region
        %s282 = ssub.s32 %s17, 1
        %s283 = smul.u32 2, %s22
        %p284 = scmp.lt.s32.totalorder %s283, 3
        %s285 = scalar_select %p284, %s283, 3
        %s286 = smul.addr %s285, 4
        %s287 = scalar_lea.vmem %s0, %s286
        %p288 = pneg %p43
        %p289 = pneg %p40
        %s290 = smul.u32 2, %s22
        %p291 = scmp.lt.s32.totalorder %s290, 3
        %s292 = scalar_select %p291, %s290, 3
        %s293 = smul.addr %s292, 4
        %s294 = scalar_lea.vmem %s1, %s293
        %p295 = pneg %p69
        %p296 = pneg %p66
        %p297 = pneg %p90
        %p298 = pneg %p87
        %p299 = pneg %p111
        %p300 = pneg %p108
        %p301 = pneg %p132
        %p302 = pneg %p129
        %p303 = pneg %p153
        %p304 = pneg %p150
        %p305 = pneg %p174
        %p306 = pneg %p171
        %p307 = pneg %p195
        %p308 = pneg %p192
        %p309 = pneg %p221
        %p310 = pneg %p218
        %s311 = sand.u32 %s208, 1
        %s312 = scalar_lea.sflag [#allocation3], %s311
        %s313 = sand.u32 %s208, 1
        %s314 = smul.addr %s313, 16
        %s315 = scalar_lea.vmem [#allocation2], %s314
        %s316 = smul.u32 2, %s22
        %p317 = scmp.lt.s32.totalorder %s316, 3
        %s318 = scalar_select %p317, %s316, 3
        %s319 = smul.addr %s318, 4
        %s320 = scalar_lea.vmem %s0, %s319
        %s321 = smul.u32 2, %s22
        %s322 = smul.u32 2, %s22
        %p323 = scmp.lt.s32.totalorder %s322, 3
        %s324 = scalar_select %p323, %s322, 3
        %s325 = smul.addr %s324, 4
        %s326 = scalar_lea.vmem %s1, %s325
        %s327 = smul.u32 2, %s22
        %s328 = smul.u32 2, %s22
        %v330 = vld [vmem:[%s320] sm:$0xf]
        %v331 = vld [vmem:[%s320 + $0x4] sm:$0xf]
        %v332 = vld [vmem:[%s2] sm:$0xf]
        %v333 = vld [vmem:[%s2 + $0x4] sm:$0xf]
        %v334 = vld [vmem:[%s2 + $0x8] sm:$0xf]
        %v335 = vld [vmem:[%s2 + $0xc] sm:$0xf]
        %v336 = vld [vmem:[%s2 + $0x10] sm:$0xf]
        %v337 = vld [vmem:[%s2 + $0x14] sm:$0xf]
        %v338 = vld [vmem:[%s2 + $0x18] sm:$0xf]
        %v339 = vld [vmem:[%s2 + $0x1c] sm:$0xf]
        %v340 = vld [vmem:[%s2 + $0x20] sm:$0xf]
        %v341 = vld [vmem:[%s2 + $0x24] sm:$0xf]
        %v342 = vld [vmem:[%s2 + $0x28] sm:$0xf]
        %v343 = vld [vmem:[%s2 + $0x2c] sm:$0xf]
        %v344 = vld [vmem:[%s2 + $0x30] sm:$0xf]
        %v345 = vld [vmem:[%s2 + $0x34] sm:$0xf]
        %v346 = vld [vmem:[%s2 + $0x38] sm:$0xf]
        %v347 = vld [vmem:[%s2 + $0x3c] sm:$0xf]
        %v348 = vld [vmem:[%s326] sm:$0xf]
        %v349 = vld [vmem:[%s326 + $0x4] sm:$0xf]
        %v350 = vld [vmem:[%s3] sm:$0xf]
        %v351 = vld [vmem:[%s3 + $0x4] sm:$0xf]
        %v354 = vunpack.c.l.b16 %v348
        %v355 = vunpack.c.l.b16 %v349
        %v356 = vpack.c.b16 %v355, %v354
        %v359 = vunpack.c.l.b16 %v350
        %v360 = vunpack.c.l.b16 %v351
        %v361 = vpack.c.b16 %v360, %v359
        %vm363 = vcmask 130048
        %v365 = vsel %vm363, %v356, 0
        %367 = vmatprep.subr.bf16.mxu0 0
        %368 = vmatpush1.bf16.msra.mxu0 %v361
        %369 = vmatprep.subr.bf16.mxu0 0
        %370 = vmatpush1.bf16.msra.mxu0 0
        %371 = vmatprep.subr.bf16.mxu0 0
        %372 = vmatpush1.bf16.msra.mxu0 0
        %373 = vmatprep.subr.bf16.mxu0 0
        %374 = vmatpush1.bf16.msra.mxu0 0
        %375 = vmatprep.subr.bf16.mxu0 0
        %376 = vmatpush1.bf16.msra.mxu0 0
        %377 = vmatprep.subr.bf16.mxu0 0
        %378 = vmatpush1.bf16.msra.mxu0 0
        %379 = vmatprep.subr.bf16.mxu0 0
        %380 = vmatpush1.bf16.msra.mxu0 0
        %381 = vmatprep.subr.bf16.mxu0 0
        %382 = vmatpush1.bf16.msra.mxu0 0
        %383 = vmatprep.subr.bf16.mxu0 0
        %384 = vmatpush1.bf16.msra.mxu0 0
        %385 = vmatprep.subr.bf16.mxu0 0
        %386 = vmatpush1.bf16.msra.mxu0 0
        %387 = vmatprep.subr.bf16.mxu0 0
        %388 = vmatpush1.bf16.msra.mxu0 0
        %389 = vmatprep.subr.bf16.mxu0 0
        %390 = vmatpush1.bf16.msra.mxu0 0
        %391 = vmatprep.subr.bf16.mxu0 0
        %392 = vmatpush1.bf16.msra.mxu0 0
        %393 = vmatprep.subr.bf16.mxu0 0
        %394 = vmatpush1.bf16.msra.mxu0 0
        %395 = vmatprep.subr.bf16.mxu0 0
        %396 = vmatpush1.bf16.msra.mxu0 0
        %397 = vmatprep.subr.bf16.mxu0 0
        %398 = vmatpush1.bf16.msra.mxu0 0
        %399 = vmatprep.mubr.bf16.mxu0 0
        %400 = vmatmul.mubr.bf16.gmra.mrb[0].mxu0 %v365
        %v401 = vpop.f32.mrb[0].mxu0
        %v402 = vadd.f32 0.0, %v401
        %v403 = vpop.f32.mrb[0].mxu0
        %v404 = vpop.f32.mrb[0].mxu0
        %v405 = vadd.f32 0.0, %v404
        %v406 = vpop.f32.mrb[0].mxu0
        %407 = vdwg.mxu0
        %v410 = vunpack.c.l.b16 %v330
        %v411 = vunpack.c.l.b16 %v331
        %v412 = vpack.c.b16 %v411, %v410
        %v430 = vunpack.c.l.b16 %v332
        %v431 = vunpack.c.l.b16 %v333
        %v432 = vunpack.c.l.b16 %v334
        %v433 = vunpack.c.l.b16 %v335
        %v434 = vunpack.c.l.b16 %v336
        %v435 = vunpack.c.l.b16 %v337
        %v436 = vunpack.c.l.b16 %v338
        %v437 = vunpack.c.l.b16 %v339
        %v438 = vunpack.c.l.b16 %v340
        %v439 = vunpack.c.l.b16 %v341
        %v440 = vunpack.c.l.b16 %v342
        %v441 = vunpack.c.l.b16 %v343
        %v442 = vunpack.c.l.b16 %v344
        %v443 = vunpack.c.l.b16 %v345
        %v444 = vunpack.c.l.b16 %v346
        %v445 = vunpack.c.l.b16 %v347
        %v446 = vpack.c.b16 %v431, %v430
        %v447 = vpack.c.b16 %v433, %v432
        %v448 = vpack.c.b16 %v435, %v434
        %v449 = vpack.c.b16 %v437, %v436
        %v450 = vpack.c.b16 %v439, %v438
        %v451 = vpack.c.b16 %v441, %v440
        %v452 = vpack.c.b16 %v443, %v442
        %v453 = vpack.c.b16 %v445, %v444
        %462 = vmatprep.subr.bf16.mxu0 0
        %463 = vmatpush1.bf16.msra.mxu0 %v446
        %464 = vmatprep.subr.bf16.mxu0 0
        %465 = vmatpush1.bf16.msra.mxu0 %v447
        %466 = vmatprep.subr.bf16.mxu0 0
        %467 = vmatpush1.bf16.msra.mxu0 %v448
        %468 = vmatprep.subr.bf16.mxu0 0
        %469 = vmatpush1.bf16.msra.mxu0 %v449
        %470 = vmatprep.subr.bf16.mxu0 0
        %471 = vmatpush1.bf16.msra.mxu0 %v450
        %472 = vmatprep.subr.bf16.mxu0 0
        %473 = vmatpush1.bf16.msra.mxu0 %v451
        %474 = vmatprep.subr.bf16.mxu0 0
        %475 = vmatpush1.bf16.msra.mxu0 %v452
        %476 = vmatprep.subr.bf16.mxu0 0
        %477 = vmatpush1.bf16.msra.mxu0 %v453
        %478 = vmatprep.subr.bf16.mxu0 0
        %479 = vmatpush1.bf16.msra.mxu0 0
        %480 = vmatprep.subr.bf16.mxu0 0
        %481 = vmatpush1.bf16.msra.mxu0 0
        %482 = vmatprep.subr.bf16.mxu0 0
        %483 = vmatpush1.bf16.msra.mxu0 0
        %484 = vmatprep.subr.bf16.mxu0 0
        %485 = vmatpush1.bf16.msra.mxu0 0
        %486 = vmatprep.subr.bf16.mxu0 0
        %487 = vmatpush1.bf16.msra.mxu0 0
        %488 = vmatprep.subr.bf16.mxu0 0
        %489 = vmatpush1.bf16.msra.mxu0 0
        %490 = vmatprep.subr.bf16.mxu0 0
        %491 = vmatpush1.bf16.msra.mxu0 0
        %492 = vmatprep.subr.bf16.mxu0 0
        %493 = vmatpush1.bf16.msra.mxu0 0
        %494 = vmatprep.mubr.bf16.mxu0 0
        %495 = vmatmul.mubr.bf16.gmra.mrb[0].mxu0 %v412
        %v496 = vpop.f32.mrb[0].mxu0
        %v497 = vadd.f32 %v402, %v496
        %v498 = vpop.f32.mrb[0].mxu0
        %v499 = vpop.f32.mrb[0].mxu0
        %v500 = vadd.f32 %v405, %v499
        %v501 = vpop.f32.mrb[0].mxu0
        %502 = vdwg.mxu0
        %v503 = vld [vmem:[%s4] sm:$0x1]
        %v505 = vlaneseq
        %v506 = vshrl.u32 %v505, 7
        %v507 = vsub.s32 0, %v506
        %v508 = vrot.slane %v503, %v507
        %v510 = vadd.f32 %v497, %v508
        %v511 = vadd.f32 %v500, %v508
        %v512 = vmax.f32 %v510, 0.0
        %v513 = vmax.f32 %v511, 0.0
        %v514 = vld [vmem:[%s5] sm:$0xf]
        %v515 = vld [vmem:[%s5 + $0x4] sm:$0xf]
        %v516 = vld [vmem:[%s5 + $0x8] sm:$0xf]
        %v517 = vld [vmem:[%s5 + $0xc] sm:$0xf]
        %v518 = vld [vmem:[%s6] sm:$0x1]
        %v519 = vpack.c.bf16 %v513, %v512
        %v521 = vlaneseq
        %v522 = vshrl.u32 %v521, 7
        %v523 = vsub.s32 0, %v522
        %v524 = vrot.slane %v518, %v523
        %v530 = vunpack.c.l.b16 %v514
        %v531 = vunpack.c.l.b16 %v515
        %v532 = vunpack.c.l.b16 %v516
        %v533 = vunpack.c.l.b16 %v517
        %v534 = vpack.c.b16 %v531, %v530
        %v535 = vpack.c.b16 %v533, %v532
        %vm538 = vcmask 261120
        %v540 = vsel %vm538, %v519, 0
        %542 = vmatprep.subr.bf16.mxu0 0
        %543 = vmatpush1.bf16.msra.mxu0 %v534
        %544 = vmatprep.subr.bf16.mxu0 0
        %545 = vmatpush1.bf16.msra.mxu0 %v535
        %546 = vmatprep.subr.bf16.mxu0 0
        %547 = vmatpush1.bf16.msra.mxu0 0
        %548 = vmatprep.subr.bf16.mxu0 0
        %549 = vmatpush1.bf16.msra.mxu0 0
        %550 = vmatprep.subr.bf16.mxu0 0
        %551 = vmatpush1.bf16.msra.mxu0 0
        %552 = vmatprep.subr.bf16.mxu0 0
        %553 = vmatpush1.bf16.msra.mxu0 0
        %554 = vmatprep.subr.bf16.mxu0 0
        %555 = vmatpush1.bf16.msra.mxu0 0
        %556 = vmatprep.subr.bf16.mxu0 0
        %557 = vmatpush1.bf16.msra.mxu0 0
        %558 = vmatprep.subr.bf16.mxu0 0
        %559 = vmatpush1.bf16.msra.mxu0 0
        %560 = vmatprep.subr.bf16.mxu0 0
        %561 = vmatpush1.bf16.msra.mxu0 0
        %562 = vmatprep.subr.bf16.mxu0 0
        %563 = vmatpush1.bf16.msra.mxu0 0
        %564 = vmatprep.subr.bf16.mxu0 0
        %565 = vmatpush1.bf16.msra.mxu0 0
        %566 = vmatprep.subr.bf16.mxu0 0
        %567 = vmatpush1.bf16.msra.mxu0 0
        %568 = vmatprep.subr.bf16.mxu0 0
        %569 = vmatpush1.bf16.msra.mxu0 0
        %570 = vmatprep.subr.bf16.mxu0 0
        %571 = vmatpush1.bf16.msra.mxu0 0
        %572 = vmatprep.subr.bf16.mxu0 0
        %573 = vmatpush1.bf16.msra.mxu0 0
        %574 = vmatprep.mubr.bf16.mxu0 0
        %575 = vmatmul.mubr.bf16.gmra.mrb[0].mxu0 %v540
        %v576 = vpop.f32.mrb[0].mxu0
        %v577 = vadd.f32 %v524, %v576
        %v578 = vpop.f32.mrb[0].mxu0
        %v579 = vpop.f32.mrb[0].mxu0
        %v580 = vadd.f32 %v524, %v579
        %v581 = vpop.f32.mrb[0].mxu0
        %582 = vdwg.mxu0
        %v583 = vmax.f32 %v577, 0.0
        %v584 = vmax.f32 %v580, 0.0
        %v585 = vpack.c.bf16 %v584, %v583
        %v586 = vld [vmem:[%s7] sm:$0xf]
        %v587 = vld [vmem:[%s7 + $0x4] sm:$0xf]
        %v588 = vld [vmem:[%s7 + $0x8] sm:$0xf]
        %v589 = vld [vmem:[%s7 + $0xc] sm:$0xf]
        %v594 = vunpack.c.l.b16 %v586
        %v595 = vunpack.c.l.b16 %v587
        %v596 = vunpack.c.l.b16 %v588
        %v597 = vunpack.c.l.b16 %v589
        %v598 = vpack.c.b16 %v595, %v594
        %v599 = vpack.c.b16 %v597, %v596
        %v603 = vsel %vm538, %v585, 0
        %605 = vmatprep.subr.bf16.mxu0 0
        %606 = vmatpush1.bf16.msra.mxu0 %v598
        %607 = vmatprep.subr.bf16.mxu0 0
        %608 = vmatpush1.bf16.msra.mxu0 %v599
        %609 = vmatprep.subr.bf16.mxu0 0
        %610 = vmatpush1.bf16.msra.mxu0 0
        %611 = vmatprep.subr.bf16.mxu0 0
        %612 = vmatpush1.bf16.msra.mxu0 0
        %613 = vmatprep.subr.bf16.mxu0 0
        %614 = vmatpush1.bf16.msra.mxu0 0
        %615 = vmatprep.subr.bf16.mxu0 0
        %616 = vmatpush1.bf16.msra.mxu0 0
        %617 = vmatprep.subr.bf16.mxu0 0
        %618 = vmatpush1.bf16.msra.mxu0 0
        %619 = vmatprep.subr.bf16.mxu0 0
        %620 = vmatpush1.bf16.msra.mxu0 0
        %621 = vmatprep.subr.bf16.mxu0 0
        %622 = vmatpush1.bf16.msra.mxu0 0
        %623 = vmatprep.subr.bf16.mxu0 0
        %624 = vmatpush1.bf16.msra.mxu0 0
        %625 = vmatprep.subr.bf16.mxu0 0
        %626 = vmatpush1.bf16.msra.mxu0 0
        %627 = vmatprep.subr.bf16.mxu0 0
        %628 = vmatpush1.bf16.msra.mxu0 0
        %629 = vmatprep.subr.bf16.mxu0 0
        %630 = vmatpush1.bf16.msra.mxu0 0
        %631 = vmatprep.subr.bf16.mxu0 0
        %632 = vmatpush1.bf16.msra.mxu0 0
        %633 = vmatprep.subr.bf16.mxu0 0
        %634 = vmatpush1.bf16.msra.mxu0 0
        %635 = vmatprep.subr.bf16.mxu0 0
        %636 = vmatpush1.bf16.msra.mxu0 0
        %637 = vmatprep.mubr.bf16.mxu0 0
        %638 = vmatmul.mubr.bf16.gmra.mrb[0].mxu0 %v603
        %v639 = vpop.f32.mrb[0].mxu0
        %v640 = vadd.f32 0.0, %v639
        %v641 = vpop.f32.mrb[0].mxu0
        %v642 = vpop.f32.mrb[0].mxu0
        %v643 = vadd.f32 0.0, %v642
        %v644 = vpop.f32.mrb[0].mxu0
        %645 = vdwg.mxu0
        %646 = vst [vmem:[%s315] sm:$0xff] %v640
        %647 = vst [vmem:[%s315 + $0x8] sm:$0xff] %v643
        %s648 = sand.u32 %s208, 1
        %s649 = scalar_lea.sflag [#allocation3], %s648
        %s650 = sand.u32 %s208, 1
        %s651 = smul.addr %s650, 16
        %s652 = scalar_lea.vmem [#allocation2], %s651
        // Predicated region
        $region53: #{tpu_custom_call.1} parent=51 // pred_check
          %p653 = pneg %p218
        $region54: #{tpu_custom_call.1} parent=51 // pred_check_branch
          %655 = sbr.rel (%p653) target = $region56
        $region55: #{tpu_custom_call.1} parent=51 // pred_region
          %s656 = smul.u32 2, %s22
          %s658 = ssub.s32 256, 256
          %659 = vsyncadd %s649, %s658
          %s660 = smul.addr %s656, 128
          %s661 = scalar_lea.hbm %s8, %s660
          %s662 = sshll.u32 %s652, 4
          %s663 = int_to_ptr.vmem [resolvable:$true] %s662
          %668 = dma.vmem_to_hbm [thread:$0]  %s663, 256, %s661, %s649, 128, 128, 8
        $region56: #{tpu_custom_call.1} parent=51 // pred_fallthru
          _
      $region52: #{tpu_custom_call.1} parent=5 // pred_fallthru
        _
      %p669 = scmp.le.s32.totalorder 2, %s17
      // Predicated region
      $region57: #{tpu_custom_call.1} parent=5 // pred_check
        %p670 = pneg %p669
      $region58: #{tpu_custom_call.1} parent=5 // pred_check_branch
        %672 = sbr.rel (%p670) target = $region60
      $region59: #{tpu_custom_call.1} parent=5 // pred_region
        %s673 = ssub.s32 %s17, 2
        // Predicated region
        $region61: #{tpu_custom_call.1} parent=59 // pred_check
          %p674 = pneg %p224
        $region62: #{tpu_custom_call.1} parent=59 // pred_check_branch
          %676 = sbr.rel (%p674) target = $region64
        $region63: #{tpu_custom_call.1} parent=59 // pred_region
          %s677 = sand.u32 %s209, 1
          %s678 = scalar_lea.sflag [#allocation3], %s677
          %s679 = sand.u32 %s209, 1
          %s680 = smul.addr %s679, 16
          %s681 = scalar_lea.vmem [#allocation2], %s680
          %682 = dma.done %s678, 256
        $region64: #{tpu_custom_call.1} parent=59 // pred_fallthru
          _
      $region60: #{tpu_custom_call.1} parent=5 // pred_fallthru
        _
    $region6: #{tpu_custom_call.1} parent=1 // loop_footer
      %s21 = sadd.s32 1, %s17
    $region7: #{tpu_custom_call.1} parent=1 // loop_footer_branch
      %16 = sbr.rel target = $region3
    $region8: #{tpu_custom_call.1} parent=1 // loop_exit
      _
    %683 = vsyncpa [#allocation3], 1
    %s684 = scalar_lea.sflag [#allocation3], 1
    %685 = vsyncpa %s684, 1

</llo_original>
